<compile_context>
chip_gen: v5e
topology: v5e:2x2
jax: 0.10.0
libtpu: 0.0.40
codegen_flags: <defaults>
</compile_context>

<pallas_src>
import functools

import jax
import jax.numpy as jnp
from jax.experimental import pallas as pl
from jax.experimental.pallas import tpu as pltpu

D_IN, D_H, D_OUT = 64, 128, 13


def _fused_affine_kernel(x_ref, w_ref, b_ref, o_ref):
    # x_ref: (block_b, 64) f32; w_ref: (64, 13) f32; b_ref: (1, 13) f32.
    # o_ref: (block_b, 13) f32 — written directly at the real output width.
    acc = jnp.dot(x_ref[...], w_ref[...], preferred_element_type=jnp.float32)
    o_ref[...] = (acc + b_ref[...]).astype(o_ref.dtype)


def fold_params(params):
    """Collapse the three Linear layers into one (64,13) weight + (1,13) bias.

    One-time cost; done at 'highest' matmul precision for tight parity with a
    true-f32 reference.  PyTorch Linear: y = x @ W.T + b, W is (out, in).
    """
    hp = jax.lax.Precision.HIGHEST
    w1t = params["w1"].T.astype(jnp.float32)          # (64, 128)
    w2t = params["w2"].T.astype(jnp.float32)          # (128, 128)
    w3t = params["w3"].T.astype(jnp.float32)          # (128, 13)
    b1 = params["b1"].astype(jnp.float32)
    b2 = params["b2"].astype(jnp.float32)
    b3 = params["b3"].astype(jnp.float32)
    wf = jnp.dot(jnp.dot(w1t, w2t, precision=hp), w3t, precision=hp)   # (64, 13)
    bf = (jnp.dot(jnp.dot(b1, w2t, precision=hp), w3t, precision=hp)
          + jnp.dot(b2, w3t, precision=hp)
          + b3)                                                        # (13,)
    return wf, bf.reshape(1, D_OUT)


def _pick_block_b(B):
    """Adaptive batch tile: as large as useful, but >=2 grid steps when B allows."""
    target = 4096                      # ~6 MiB double-buffered VMEM; fits v5e defaults
    if B <= 8:
        return 8
    half = -(-B // 2)                  # cdiv(B, 2) -> guarantees >=2 grid steps
    return max(8, min(target, ((half + 7) // 8) * 8))


@functools.partial(jax.jit, static_argnames=("block_b",))
def _fused_affine(x, wf, bf2, block_b):
    B = x.shape[0]
    n_blocks = pl.cdiv(B, block_b)
    bytes_accessed = (B * D_IN + D_IN * D_OUT + D_OUT + B * D_OUT) * 4
    return pl.pallas_call(
        _fused_affine_kernel,
        out_shape=jax.ShapeDtypeStruct((B, D_OUT), jnp.float32),
        grid_spec=pltpu.PrefetchScalarGridSpec(
            num_scalar_prefetch=0,
            grid=(n_blocks,),
            in_specs=[
                pl.BlockSpec((block_b, D_IN), lambda i: (i, 0)),   # x tile
                pl.BlockSpec((D_IN, D_OUT), lambda i: (0, 0)),     # fused W (grid-invariant)
                pl.BlockSpec((1, D_OUT), lambda i: (0, 0)),        # fused b (grid-invariant)
            ],
            out_specs=pl.BlockSpec((block_b, D_OUT), lambda i: (i, 0)),
        ),
        compiler_params=pltpu.CompilerParams(
            dimension_semantics=("parallel",)),
        cost_estimate=pl.CostEstimate(
            flops=2 * B * D_IN * D_OUT,
            transcendentals=0,
            bytes_accessed=bytes_accessed),
    )(x, wf, bf2)


def rhythm_signature_embedding(x, wf, bf2, block_b=None):
    """x: (B, 64) f32; wf: (64, 13) f32; bf2: (1, 13) f32. Returns (B, 13) f32."""
    B, d_in = x.shape
    assert d_in == D_IN
    if block_b is None:
        block_b = _pick_block_b(B)
    return _fused_affine(x, wf, bf2, block_b)


def init_params(key):
    """Deterministic synthetic parameters, PyTorch nn.Linear layout (out, in)."""
    k1, k2, k3, k4, k5, k6 = jax.random.split(key, 6)
    s1 = 1.0 / jnp.sqrt(64.0)
    s2 = 1.0 / jnp.sqrt(128.0)
    return {
        "w1": jax.random.uniform(k1, (128, 64), jnp.float32, -s1, s1),
        "b1": jax.random.uniform(k2, (128,), jnp.float32, -s1, s1),
        "w2": jax.random.uniform(k3, (128, 128), jnp.float32, -s2, s2),
        "b2": jax.random.uniform(k4, (128,), jnp.float32, -s2, s2),
        "w3": jax.random.uniform(k5, (13, 128), jnp.float32, -s2, s2),
        "b3": jax.random.uniform(k6, (13,), jnp.float32, -s2, s2),
    }


def reference(x, params):
    """Literal 3-layer PyTorch-equivalent forward (no algebraic collapse)."""
    h1 = x @ params["w1"].T + params["b1"]
    h2 = h1 @ params["w2"].T + params["b2"]
    return h2 @ params["w3"].T + params["b3"]


if __name__ == "__main__":
    key = jax.random.PRNGKey(0)
    kx, kp = jax.random.split(key)

    # Non-multiple-of-block_b batch exercises the masked partial trailing block
    # and yields a 2-step grid (so the "parallel" axis can use both v7x TCs).
    B = 300
    x = jax.random.normal(kx, (B, 64), jnp.float32)
    params = init_params(kp)

    # One-time weight/bias fold (hoisted out of the per-call path).
    wf, bf2 = fold_params(params)

    out = jax.block_until_ready(rhythm_signature_embedding(x, wf, bf2))
    assert out.shape == (B, 13), out.shape

    ref = reference(x, params)
    assert jnp.allclose(out, ref, atol=2e-4, rtol=2e-4), "mismatch vs 3-layer reference"

    print("KERNEL_OK")
</pallas_src>

<mosaic_0001>
module attributes {stable_mosaic.version = 11 : i64} {
  func.func @_fused_affine_kernel(%arg0: i32, %arg1: memref<152x64xf32, #tpu.memory_space<vmem>>, %arg2: memref<64x13xf32, #tpu.memory_space<vmem>>, %arg3: memref<1x13xf32, #tpu.memory_space<vmem>>, %arg4: memref<152x13xf32, #tpu.memory_space<vmem>>) attributes {dimension_semantics = [#tpu.dimension_semantics<parallel>], iteration_bounds = array<i64: 2>, scalar_prefetch = 0 : i64, scratch_operands = 0 : i64, tpu.core_type = #tpu.core_type<tc>, window_params = [{transform_indices = @transform_0, window_bounds = array<i64: 152, 64>}, {pipeline_mode = #tpu.pipeline_mode<synchronous>, transform_indices = @transform_1, window_bounds = array<i64: 64, 13>}, {pipeline_mode = #tpu.pipeline_mode<synchronous>, transform_indices = @transform_2, window_bounds = array<i64: 1, 13>}, {transform_indices = @transform_3, window_bounds = array<i64: 152, 13>}]} {
    %c0 = arith.constant 0 : index
    %c0_0 = arith.constant 0 : index
    %0 = vector.load %arg1[%c0, %c0_0] : memref<152x64xf32, #tpu.memory_space<vmem>>, vector<152x64xf32>
    %c0_1 = arith.constant 0 : index
    %c0_2 = arith.constant 0 : index
    %1 = vector.load %arg2[%c0_1, %c0_2] : memref<64x13xf32, #tpu.memory_space<vmem>>, vector<64x13xf32>
    %cst = arith.constant dense<0.000000e+00> : vector<152x13xf32>
    %2 = tpu.matmul %0, %1, %cst {dimension_numbers = #tpu.dot_dimension_numbers<[1], [0], [0], [1], [0, 0, 1, 1], [], []>} : vector<152x64xf32>, vector<64x13xf32>, vector<152x13xf32> -> vector<152x13xf32>
    %c0_3 = arith.constant 0 : index
    %c0_4 = arith.constant 0 : index
    %3 = vector.load %arg3[%c0_3, %c0_4] : memref<1x13xf32, #tpu.memory_space<vmem>>, vector<1x13xf32>
    %4 = vector.broadcast %3 : vector<1x13xf32> to vector<152x13xf32>
    %5 = arith.addf %2, %4 : vector<152x13xf32>
    %c0_5 = arith.constant 0 : index
    %c0_6 = arith.constant 0 : index
    %6 = vector.load %arg4[%c0_5, %c0_6] : memref<152x13xf32, #tpu.memory_space<vmem>>, vector<152x13xf32>
    tpu.vector_store %arg4[%c0_5, %c0_6], %5 {strides = array<i32>} : memref<152x13xf32, #tpu.memory_space<vmem>>, vector<152x13xf32>,
    return
  }
  func.func @transform_0(%arg0: i32) -> (i32, i32) {
    %c0_i32 = arith.constant 0 : i32
    %c0_i32_0 = arith.constant 0 : i32
    return %arg0, %c0_i32 : i32, i32
  }
  func.func @transform_1(%arg0: i32) -> (i32, i32) {
    %c0_i32 = arith.constant 0 : i32
    %c0_i32_0 = arith.constant 0 : i32
    %c0_i32_1 = arith.constant 0 : i32
    return %c0_i32, %c0_i32_0 : i32, i32
  }
  func.func @transform_2(%arg0: i32) -> (i32, i32) {
    %c0_i32 = arith.constant 0 : i32
    %c0_i32_0 = arith.constant 0 : i32
    %c0_i32_1 = arith.constant 0 : i32
    return %c0_i32, %c0_i32_0 : i32, i32
  }
  func.func @transform_3(%arg0: i32) -> (i32, i32) {
    %c0_i32 = arith.constant 0 : i32
    %c0_i32_0 = arith.constant 0 : i32
    return %arg0, %c0_i32 : i32, i32
  }
}

</mosaic_0001>

<llo_original>
// kernel: _fused_affine.1
$region0: #{_fused_affine.1}
  #allocation0 [shape = 'u32[]', space=smem, size = 0x4, offset = 0x4, fixed_abs, tag = 'smem constant byte address 0x4 - core index']
  #allocation1 [shape = 'u32[72,128]{1,0:T(1,128)}', space=vmem, size = 0x9000, scoped, tag = 'internal scratch']
  %s0 = inlined_call_operand.vmem [shape: f32[300,64], index: 0, kind: input, shape index: {}]
  %s1 = inlined_call_operand.vmem [shape: f32[64,13], index: 1, kind: input, shape index: {}]
  %s2 = inlined_call_operand.vmem [shape: f32[1,13], index: 2, kind: input, shape index: {}]
  %s3 = inlined_call_operand.vmem [shape: f32[300,13], index: 3, kind: output, shape index: {}]
  %s4 = sld [smem:[#allocation0]]
  $region45: #{_fused_affine.1} parent=0
    _
  %s6 = ssub.s32 1, %s4
  %s7 = scalar_select 0, %s6, %s4
  loop: start=0, step=1, limit=4
  $region2: #{_fused_affine.1} parent=0 // loop_pre_header
    _
  $region3: #{_fused_affine.1} parent=0 // loop_header
    %s9 = sphi 0, %s13
    %p10 = scmp.ge.s32.totalorder %s9, 4
    %s19 = sphi 0, %s21
    %s22 = sphi 0, %s19
    %s23 = sphi 0, %s22
    %s39 = sphi 0, %s23
    %s43 = sphi 0, %s43
    %s45 = sphi 0, %s43
    %s46 = sphi 0, %s45
    %s60 = sphi 0, %s46
    %s64 = sphi 0, %s64
    %s66 = sphi 0, %s64
    %s67 = sphi 0, %s66
    %s81 = sphi 0, %s67
    %s87 = sphi 0, %s89
    %s90 = sphi 0, %s87
    %s91 = sphi 0, %s90
    %s107 = sphi 0, %s91
  $region4: #{_fused_affine.1} parent=0 // loop_header_branch
    %12 = sbr.rel (%p10) target = $region8
  $region5: #{_fused_affine.1} parent=0 // loop_body
    %s14 = ssub.s32 %s9, 1
    %s15 = ssub.s32 %s9, 2
    %s16 = sadd.s32 %s9, 1
    %s17 = ssub.s32 %s9, %s16
    %p18 = scmp.eq.s32.totalorder %s17, 0
    %s20 = sadd.s32 %s19, 1
    %s21 = scalar_select %p18, %s19, %s20
    %p24 = pneg %p18
    %p25 = scmp.eq.s32.totalorder %s9, 1
    %p26 = por %p24, %p25
    %p27 = scmp.ne.s32.totalorder %s19, %s22
    %p28 = scmp.eq.s32.totalorder %s9, 0
    %p29 = por %p27, %p28
    %p30 = scmp.ne.s32.totalorder %s19, %s22
    %p31 = scmp.eq.s32.totalorder %s14, 1
    %p32 = por %p30, %p31
    %p33 = scmp.ne.s32.totalorder %s22, %s23
    %p34 = scmp.eq.s32.totalorder %s14, 0
    %p35 = por %p33, %p34
    %p36 = scmp.ne.s32.totalorder %s22, %s23
    %p37 = scmp.eq.s32.totalorder %s15, 1
    %p38 = por %p36, %p37
    %p40 = scmp.ne.s32.totalorder %s23, %s39
    %p41 = scmp.eq.s32.totalorder %s15, 0
    %p42 = por %p40, %p41
    %s44 = sadd.s32 %s43, 1
    %p47 = scmp.eq.s32.totalorder %s9, 1
    %p48 = scmp.ne.s32.totalorder %s43, %s45
    %p49 = scmp.eq.s32.totalorder %s9, 0
    %p50 = por %p48, %p49
    %p51 = scmp.ne.s32.totalorder %s43, %s45
    %p52 = scmp.eq.s32.totalorder %s14, 1
    %p53 = por %p51, %p52
    %p54 = scmp.ne.s32.totalorder %s45, %s46
    %p55 = scmp.eq.s32.totalorder %s14, 0
    %p56 = por %p54, %p55
    %p57 = scmp.ne.s32.totalorder %s45, %s46
    %p58 = scmp.eq.s32.totalorder %s15, 1
    %p59 = por %p57, %p58
    %p61 = scmp.ne.s32.totalorder %s46, %s60
    %p62 = scmp.eq.s32.totalorder %s15, 0
    %p63 = por %p61, %p62
    %s65 = sadd.s32 %s64, 1
    %p68 = scmp.eq.s32.totalorder %s9, 1
    %p69 = scmp.ne.s32.totalorder %s64, %s66
    %p70 = scmp.eq.s32.totalorder %s9, 0
    %p71 = por %p69, %p70
    %p72 = scmp.ne.s32.totalorder %s64, %s66
    %p73 = scmp.eq.s32.totalorder %s14, 1
    %p74 = por %p72, %p73
    %p75 = scmp.ne.s32.totalorder %s66, %s67
    %p76 = scmp.eq.s32.totalorder %s14, 0
    %p77 = por %p75, %p76
    %p78 = scmp.ne.s32.totalorder %s66, %s67
    %p79 = scmp.eq.s32.totalorder %s15, 1
    %p80 = por %p78, %p79
    %p82 = scmp.ne.s32.totalorder %s67, %s81
    %p83 = scmp.eq.s32.totalorder %s15, 0
    %p84 = por %p82, %p83
    %s85 = ssub.s32 %s9, %s16
    %p86 = scmp.eq.s32.totalorder %s85, 0
    %s88 = sadd.s32 %s87, 1
    %s89 = scalar_select %p86, %s87, %s88
    %p92 = pneg %p86
    %p93 = scmp.eq.s32.totalorder %s9, 1
    %p94 = por %p92, %p93
    %p95 = scmp.ne.s32.totalorder %s87, %s90
    %p96 = scmp.eq.s32.totalorder %s9, 0
    %p97 = por %p95, %p96
    %p98 = scmp.ne.s32.totalorder %s87, %s90
    %p99 = scmp.eq.s32.totalorder %s14, 1
    %p100 = por %p98, %p99
    %p101 = scmp.ne.s32.totalorder %s90, %s91
    %p102 = scmp.eq.s32.totalorder %s14, 0
    %p103 = por %p101, %p102
    %p104 = scmp.ne.s32.totalorder %s90, %s91
    %p105 = scmp.eq.s32.totalorder %s15, 1
    %p106 = por %p104, %p105
    %p108 = scmp.ne.s32.totalorder %s91, %s107
    %p109 = scmp.eq.s32.totalorder %s15, 0
    %p110 = por %p108, %p109
    %p111 = scmp.le.s32.totalorder 1, %s9
    %p112 = scmp.lt.s32.totalorder %s9, 3
    %p113 = pnand %p111, %p112
    %p114 = pneg %p113
    // Predicated region
    $region9: #{_fused_affine.1} parent=5 // pred_check
      _
    $region10: #{_fused_affine.1} parent=5 // pred_check_branch
      %116 = sbr.rel (%p113) target = $region12
    $region11: #{_fused_affine.1} parent=5 // pred_region
      %s117 = ssub.s32 %s9, 1
      // Predicated region
      $region13: #{_fused_affine.1} parent=11 // pred_check
        %p118 = pneg %p56
      $region14: #{_fused_affine.1} parent=11 // pred_check_branch
        %120 = sbr.rel (%p118) target = $region16
      $region15: #{_fused_affine.1} parent=11 // pred_region
        _
      $region16: #{_fused_affine.1} parent=11 // pred_fallthru
        _
      // Predicated region
      $region17: #{_fused_affine.1} parent=11 // pred_check
        %p121 = pneg %p77
      $region18: #{_fused_affine.1} parent=11 // pred_check_branch
        %123 = sbr.rel (%p121) target = $region20
      $region19: #{_fused_affine.1} parent=11 // pred_region
        _
      $region20: #{_fused_affine.1} parent=11 // pred_fallthru
        _
    $region12: #{_fused_affine.1} parent=5 // pred_fallthru
      _
    %p124 = scmp.lt.s32.totalorder %s9, 2
    // Predicated region
    $region21: #{_fused_affine.1} parent=5 // pred_check
      %p125 = pneg %p124
    $region22: #{_fused_affine.1} parent=5 // pred_check_branch
      %127 = sbr.rel (%p125) target = $region24
    $region23: #{_fused_affine.1} parent=5 // pred_region
      // Predicated region
      $region25: #{_fused_affine.1} parent=23 // pred_check
        %p128 = pneg %p29
      $region26: #{_fused_affine.1} parent=23 // pred_check_branch
        %130 = sbr.rel (%p128) target = $region28
      $region27: #{_fused_affine.1} parent=23 // pred_region
        %s131 = smul.u32 19, %s9
        %p132 = scmp.lt.s32.totalorder %s131, 37
        %s133 = scalar_select %p132, %s131, 37
        %s134 = smul.addr %s133, 8
        %s135 = scalar_lea.vmem %s0, %s134
        %s136 = smul.u32 19, %s9
      $region28: #{_fused_affine.1} parent=23 // pred_fallthru
        _
    $region24: #{_fused_affine.1} parent=5 // pred_fallthru
      _
    %p137 = scmp.le.s32.totalorder 1, %s9
    %p138 = scmp.lt.s32.totalorder %s9, 3
    %p139 = pnand %p137, %p138
    %p140 = pneg %p139
    // Predicated region
    $region29: #{_fused_affine.1} parent=5 // pred_check
      _
    $region30: #{_fused_affine.1} parent=5 // pred_check_branch
      %142 = sbr.rel (%p139) target = $region32
    $region31: #{_fused_affine.1} parent=5 // pred_region
      %s143 = ssub.s32 %s9, 1
      %s144 = smul.u32 19, %s14
      %p145 = scmp.lt.s32.totalorder %s144, 37
      %s146 = scalar_select %p145, %s144, 37
      %s147 = smul.addr %s146, 8
      %s148 = scalar_lea.vmem %s0, %s147
      %p149 = pneg %p35
      %p150 = pneg %p32
      %p151 = pneg %p56
      %p152 = pneg %p53
      %p153 = pneg %p77
      %p154 = pneg %p74
      %p155 = pneg %p103
      %p156 = pneg %p100
      %s157 = smul.u32 19, %s14
      %p158 = scmp.lt.s32.totalorder %s157, 37
      %s159 = scalar_select %p158, %s157, 37
      %s160 = smul.addr %s159, 8
      %s161 = scalar_lea.vmem %s3, %s160
      %s162 = smul.u32 19, %s14
      %p163 = scmp.lt.s32.totalorder %s162, 37
      %s164 = scalar_select %p163, %s162, 37
      %s165 = smul.addr %s164, 8
      %s166 = scalar_lea.vmem %s0, %s165
      %s167 = smul.u32 19, %s14
      %s168 = smul.u32 19, %s14
      %p169 = scmp.lt.s32.totalorder %s168, 37
      %s170 = scalar_select %p169, %s168, 37
      %s171 = smul.addr %s170, 8
      %s172 = scalar_lea.vmem %s3, %s171
      %s173 = smul.u32 19, %s14
      %v174 = vld [vmem:[%s166] sm:$0xff]
      %v175 = vld [vmem:[%s166 + $0x8] sm:$0xff]
      %v176 = vld [vmem:[%s166 + $0x10] sm:$0xff]
      %v177 = vld [vmem:[%s166 + $0x18] sm:$0xff]
      %v178 = vld [vmem:[%s166 + $0x20] sm:$0xff]
      %v179 = vld [vmem:[%s166 + $0x28] sm:$0xff]
      %v180 = vld [vmem:[%s166 + $0x30] sm:$0xff]
      %v181 = vld [vmem:[%s166 + $0x38] sm:$0xff]
      %v182 = vld [vmem:[%s166 + $0x40] sm:$0xff]
      %v183 = vld [vmem:[%s166 + $0x48] sm:$0xff]
      %v184 = vld [vmem:[%s166 + $0x50] sm:$0xff]
      %v185 = vld [vmem:[%s166 + $0x58] sm:$0xff]
      %v186 = vld [vmem:[%s166 + $0x60] sm:$0xff]
      %v187 = vld [vmem:[%s166 + $0x68] sm:$0xff]
      %v188 = vld [vmem:[%s166 + $0x70] sm:$0xff]
      %v189 = vld [vmem:[%s166 + $0x78] sm:$0xff]
      %v190 = vld [vmem:[%s166 + $0x80] sm:$0xff]
      %v191 = vld [vmem:[%s166 + $0x88] sm:$0xff]
      %v192 = vld [vmem:[%s166 + $0x90] sm:$0xff]
      %v193 = vld [vmem:[%s1] sm:$0xff]
      %v194 = vld [vmem:[%s1 + $0x8] sm:$0xff]
      %v195 = vld [vmem:[%s1 + $0x10] sm:$0xff]
      %v196 = vld [vmem:[%s1 + $0x18] sm:$0xff]
      %v197 = vld [vmem:[%s1 + $0x20] sm:$0xff]
      %v198 = vld [vmem:[%s1 + $0x28] sm:$0xff]
      %v199 = vld [vmem:[%s1 + $0x30] sm:$0xff]
      %v200 = vld [vmem:[%s1 + $0x38] sm:$0xff]
      %v201 = vld [vmem:[%s2] sm:$0x1]
      %v203 = vperm.slane %v201, 0
      %vm205 = vcmask 523264
      %v207 = vsel %vm205, %v174, 0
      %v210 = vsel %vm205, %v175, 0
      %v213 = vsel %vm205, %v176, 0
      %v216 = vsel %vm205, %v177, 0
      %v219 = vsel %vm205, %v178, 0
      %v222 = vsel %vm205, %v179, 0
      %v225 = vsel %vm205, %v180, 0
      %v228 = vsel %vm205, %v181, 0
      %v231 = vsel %vm205, %v182, 0
      %v234 = vsel %vm205, %v183, 0
      %v237 = vsel %vm205, %v184, 0
      %v240 = vsel %vm205, %v185, 0
      %v243 = vsel %vm205, %v186, 0
      %v246 = vsel %vm205, %v187, 0
      %v249 = vsel %vm205, %v188, 0
      %v252 = vsel %vm205, %v189, 0
      %v255 = vsel %vm205, %v190, 0
      %v258 = vsel %vm205, %v191, 0
      %v261 = vsel %vm205, %v192, 0
      %263 = vmatpush.msra.mxu0 0.0
      %264 = vmatpush.msra.mxu0 0.0
      %265 = vmatpush.msra.mxu0 0.0
      %266 = vmatpush.msra.mxu0 0.0
      %267 = vmatpush.msra.mxu0 0.0
      %268 = vmatpush.msra.mxu0 0.0
      %269 = vmatpush.msra.mxu0 0.0
      %270 = vmatpush.msra.mxu0 0.0
      %271 = vmatpush.msra.mxu0 %v200
      %272 = vmatpush.msra.mxu0 %v199
      %273 = vmatpush.msra.mxu0 %v198
      %274 = vmatpush.msra.mxu0 %v197
      %275 = vmatpush.msra.mxu0 %v196
      %276 = vmatpush.msra.mxu0 %v195
      %277 = vmatpush.msra.mxu0 %v194
      %278 = vmatpush.msra.mxu0 %v193
      %279 = vmatmul.f32.gmra.mxu0 %v207
      %v280 = vpop.f32.mrf.mxu0
      %v281 = vadd.f32 %v203, %v280
      %282 = vmatmul.f32.gmra.mxu0 %v210
      %v283 = vpop.f32.mrf.mxu0
      %v284 = vadd.f32 %v203, %v283
      %285 = vmatmul.f32.gmra.mxu0 %v213
      %v286 = vpop.f32.mrf.mxu0
      %v287 = vadd.f32 %v203, %v286
      %288 = vmatmul.f32.gmra.mxu0 %v216
      %v289 = vpop.f32.mrf.mxu0
      %v290 = vadd.f32 %v203, %v289
      %291 = vmatmul.f32.gmra.mxu0 %v219
      %v292 = vpop.f32.mrf.mxu0
      %v293 = vadd.f32 %v203, %v292
      %294 = vmatmul.f32.gmra.mxu0 %v222
      %v295 = vpop.f32.mrf.mxu0
      %v296 = vadd.f32 %v203, %v295
      %297 = vmatmul.f32.gmra.mxu0 %v225
      %v298 = vpop.f32.mrf.mxu0
      %v299 = vadd.f32 %v203, %v298
      %300 = vmatmul.f32.gmra.mxu0 %v228
      %v301 = vpop.f32.mrf.mxu0
      %v302 = vadd.f32 %v203, %v301
      %303 = vmatmul.f32.gmra.mxu0 %v231
      %v304 = vpop.f32.mrf.mxu0
      %v305 = vadd.f32 %v203, %v304
      %306 = vmatmul.f32.gmra.mxu0 %v234
      %v307 = vpop.f32.mrf.mxu0
      %v308 = vadd.f32 %v203, %v307
      %309 = vmatmul.f32.gmra.mxu0 %v237
      %v310 = vpop.f32.mrf.mxu0
      %v311 = vadd.f32 %v203, %v310
      %312 = vmatmul.f32.gmra.mxu0 %v240
      %v313 = vpop.f32.mrf.mxu0
      %v314 = vadd.f32 %v203, %v313
      %315 = vmatmul.f32.gmra.mxu0 %v243
      %v316 = vpop.f32.mrf.mxu0
      %v317 = vadd.f32 %v203, %v316
      %318 = vmatmul.f32.gmra.mxu0 %v246
      %v319 = vpop.f32.mrf.mxu0
      %v320 = vadd.f32 %v203, %v319
      %321 = vmatmul.f32.gmra.mxu0 %v249
      %v322 = vpop.f32.mrf.mxu0
      %v323 = vadd.f32 %v203, %v322
      %324 = vmatmul.f32.gmra.mxu0 %v252
      %v325 = vpop.f32.mrf.mxu0
      %v326 = vadd.f32 %v203, %v325
      %327 = vmatmul.f32.gmra.mxu0 %v255
      %v328 = vpop.f32.mrf.mxu0
      %v329 = vadd.f32 %v203, %v328
      %330 = vmatmul.f32.gmra.mxu0 %v258
      %v331 = vpop.f32.mrf.mxu0
      %v332 = vadd.f32 %v203, %v331
      %333 = vmatmul.f32.gmra.mxu0 %v261
      %v334 = vpop.f32.mrf.mxu0
      %v335 = vadd.f32 %v203, %v334
      %336 = vdwg.mxu0
      %vm337 = vcmask 105472
      %338 = vst.msk [vmem:[%s172] sm:$0xff] %vm337, %v281
      %339 = vst.msk [vmem:[%s172 + $0x8] sm:$0xff] %vm337, %v284
      %340 = vst.msk [vmem:[%s172 + $0x10] sm:$0xff] %vm337, %v287
      %341 = vst.msk [vmem:[%s172 + $0x18] sm:$0xff] %vm337, %v290
      %342 = vst.msk [vmem:[%s172 + $0x20] sm:$0xff] %vm337, %v293
      %343 = vst.msk [vmem:[%s172 + $0x28] sm:$0xff] %vm337, %v296
      %344 = vst.msk [vmem:[%s172 + $0x30] sm:$0xff] %vm337, %v299
      %345 = vst.msk [vmem:[%s172 + $0x38] sm:$0xff] %vm337, %v302
      %346 = vst.msk [vmem:[%s172 + $0x40] sm:$0xff] %vm337, %v305
      %347 = vst.msk [vmem:[%s172 + $0x48] sm:$0xff] %vm337, %v308
      %348 = vst.msk [vmem:[%s172 + $0x50] sm:$0xff] %vm337, %v311
      %349 = vst.msk [vmem:[%s172 + $0x58] sm:$0xff] %vm337, %v314
      %350 = vst.msk [vmem:[%s172 + $0x60] sm:$0xff] %vm337, %v317
      %351 = vst.msk [vmem:[%s172 + $0x68] sm:$0xff] %vm337, %v320
      %352 = vst.msk [vmem:[%s172 + $0x70] sm:$0xff] %vm337, %v323
      %353 = vst.msk [vmem:[%s172 + $0x78] sm:$0xff] %vm337, %v326
      %354 = vst.msk [vmem:[%s172 + $0x80] sm:$0xff] %vm337, %v329
      %355 = vst.msk [vmem:[%s172 + $0x88] sm:$0xff] %vm337, %v332
      %356 = vst.msk [vmem:[%s172 + $0x90] sm:$0xff] %vm337, %v335
      %s357 = smul.u32 19, %s14
      %p358 = scmp.lt.s32.totalorder %s357, 37
      %s359 = scalar_select %p358, %s357, 37
      %s360 = smul.addr %s359, 8
      %s361 = scalar_lea.vmem %s3, %s360
      // Predicated region
      $region33: #{_fused_affine.1} parent=31 // pred_check
        %p362 = pneg %p100
      $region34: #{_fused_affine.1} parent=31 // pred_check_branch
        %364 = sbr.rel (%p362) target = $region36
      $region35: #{_fused_affine.1} parent=31 // pred_region
        %s365 = smul.u32 19, %s14
      $region36: #{_fused_affine.1} parent=31 // pred_fallthru
        _
    $region32: #{_fused_affine.1} parent=5 // pred_fallthru
      _
    %p366 = scmp.le.s32.totalorder 2, %s9
    // Predicated region
    $region37: #{_fused_affine.1} parent=5 // pred_check
      %p367 = pneg %p366
    $region38: #{_fused_affine.1} parent=5 // pred_check_branch
      %369 = sbr.rel (%p367) target = $region40
    $region39: #{_fused_affine.1} parent=5 // pred_region
      %s370 = ssub.s32 %s9, 2
      // Predicated region
      $region41: #{_fused_affine.1} parent=39 // pred_check
        %p371 = pneg %p106
      $region42: #{_fused_affine.1} parent=39 // pred_check_branch
        %373 = sbr.rel (%p371) target = $region44
      $region43: #{_fused_affine.1} parent=39 // pred_region
        %s374 = smul.u32 19, %s15
        %p375 = scmp.lt.s32.totalorder %s374, 37
        %s376 = scalar_select %p375, %s374, 37
        %s377 = smul.addr %s376, 8
        %s378 = scalar_lea.vmem %s3, %s377
      $region44: #{_fused_affine.1} parent=39 // pred_fallthru
        _
    $region40: #{_fused_affine.1} parent=5 // pred_fallthru
      _
  $region6: #{_fused_affine.1} parent=0 // loop_footer
    %s13 = sadd.s32 1, %s9
  $region7: #{_fused_affine.1} parent=0 // loop_footer_branch
    %8 = sbr.rel target = $region3
  $region8: #{_fused_affine.1} parent=0 // loop_exit
    _

</llo_original>
